<compile_context>
chip_gen: v5e
topology: v5e:2x2
jax: 0.10.0
libtpu: 0.0.40
codegen_flags: <defaults>
</compile_context>

<pallas_src>
import functools

import jax
import jax.numpy as jnp
from jax import lax
from jax.experimental import pallas as pl
from jax.experimental.pallas import tpu as pltpu

COSINE_EPS = 1e-8  # torch.nn.CosineSimilarity default


def _round_up(x, m):
    return (x + m - 1) // m * m


def _cosine_kernel(s_ref, q_ref, o_ref, dot_acc, ss_acc, qq_acc, *,
                   eps, feat_dim, feat_block, need_mask):
    """Accumulate s.q, |s|^2, |q|^2 into lane-dense partials; finalize on last tile."""
    k = pl.program_id(1)

    @pl.when(k == 0)
    def _init():
        dot_acc[...] = jnp.zeros_like(dot_acc)
        ss_acc[...] = jnp.zeros_like(ss_acc)
        qq_acc[...] = jnp.zeros_like(qq_acc)

    tn = dot_acc.shape[0]
    n_chunks = feat_block // 128  # feat_block is always a multiple of 128

    dot_p = jnp.zeros((tn, 128), jnp.float32)
    ss_p = jnp.zeros((tn, 128), jnp.float32)
    qq_p = jnp.zeros((tn, 128), jnp.float32)

    # Pure-VALU hot loop: 128-wide, tile-aligned static slices; f32 accumulation.
    for c in range(n_chunks):
        lo = c * 128
        s = s_ref[:, lo:lo + 128].astype(jnp.float32)
        q = q_ref[:, lo:lo + 128].astype(jnp.float32)
        if need_mask:
            # Zero out columns >= feat_dim (only the ragged last feature tile
            # actually has garbage; for earlier tiles the mask is all-true).
            col = k * feat_block + lo + lax.broadcasted_iota(
                jnp.int32, (tn, 128), 1)
            valid = col < feat_dim
            s = jnp.where(valid, s, 0.0)
            q = jnp.where(valid, q, 0.0)
        dot_p = dot_p + s * q
        ss_p = ss_p + s * s
        qq_p = qq_p + q * q

    dot_acc[...] += dot_p
    ss_acc[...] += ss_p
    qq_acc[...] += qq_p

    @pl.when(k == pl.num_programs(1) - 1)
    def _finalize():
        # Single cross-lane reduce per accumulator, only once per row tile.
        dot = jnp.sum(dot_acc[...], axis=-1, keepdims=True)
        ss = jnp.sum(ss_acc[...], axis=-1, keepdims=True)
        qq = jnp.sum(qq_acc[...], axis=-1, keepdims=True)
        # dot / max(sqrt(ss)*sqrt(qq), eps) == dot * rsqrt(max(ss*qq, eps^2))
        denom_sq = jnp.maximum(ss * qq, eps * eps)
        o_ref[...] = (dot * lax.rsqrt(denom_sq)).astype(o_ref.dtype)


def cosine_classifier(support, query, *, eps=COSINE_EPS,
                      row_tile=256, feat_tile=2048):
    """support, query: (N, ...) -> (N,) row-wise cosine similarity (torch semantics)."""
    if support.shape[0] != query.shape[0]:
        raise ValueError("support and query must share the batch dimension")
    N = support.shape[0]
    s = support.reshape(N, -1)
    q = query.reshape(N, -1)
    if s.shape[1] != q.shape[1]:
        raise ValueError("support and query must flatten to the same feature size")
    D = s.shape[1]

    out_dtype = jnp.result_type(s.dtype, q.dtype)
    if not jnp.issubdtype(out_dtype, jnp.floating):
        s = s.astype(jnp.float32)
        q = q.astype(jnp.float32)
        out_dtype = jnp.float32

    feat_tile = max(128, _round_up(feat_tile, 128))
    row_tile = max(8, _round_up(row_tile, 8))

    # Row tile: a multiple of 8 (sublane quantum) or the full batch dim.
    if N <= 8:
        tn = N
    else:
        tn = min(row_tile, _round_up(N, 8))
        if N >= 16:  # keep >= 2 row tiles so both v7x TensorCores see work
            tn = min(tn, _round_up(-(-N // 2), 8))
    # Feature tile: always a multiple of 128; ragged last tile is masked in-kernel.
    td = min(feat_tile, _round_up(D, 128))
    need_mask = (D % td) != 0

    grid = (pl.cdiv(N, tn), pl.cdiv(D, td))  # reduction (feature) axis last

    in_bytes = N * D * (jnp.dtype(s.dtype).itemsize + jnp.dtype(q.dtype).itemsize)
    cost = pl.CostEstimate(
        flops=6 * N * D,
        transcendentals=N,
        bytes_accessed=in_bytes + N * jnp.dtype(out_dtype).itemsize,
    )

    kernel = functools.partial(
        _cosine_kernel, eps=float(eps), feat_dim=D, feat_block=td,
        need_mask=need_mask)

    out = pl.pallas_call(
        kernel,
        out_shape=jax.ShapeDtypeStruct((N, 1), out_dtype),
        grid_spec=pltpu.PrefetchScalarGridSpec(
            num_scalar_prefetch=0,
            grid=grid,
            in_specs=[pl.BlockSpec((tn, td), lambda i, k: (i, k)),
                      pl.BlockSpec((tn, td), lambda i, k: (i, k))],
            out_specs=pl.BlockSpec((tn, 1), lambda i, k: (i, 0)),
            scratch_shapes=[pltpu.VMEM((tn, 128), jnp.float32)] * 3),
        compiler_params=pltpu.CompilerParams(
            dimension_semantics=("parallel", "arbitrary"),
            vmem_limit_bytes=32 << 20),
        cost_estimate=cost,
    )(s, q)
    return out[:, 0]


if __name__ == "__main__":
    key = jax.random.PRNGKey(0)
    k1, k2, k3, k4 = jax.random.split(key, 4)

    def reference(support, query, eps=COSINE_EPS):
        n = support.shape[0]
        sf = support.reshape(n, -1).astype(jnp.float32)
        qf = query.reshape(n, -1).astype(jnp.float32)
        denom = jnp.maximum(
            jnp.linalg.norm(sf, axis=1) * jnp.linalg.norm(qf, axis=1), eps)
        return jnp.sum(sf * qf, axis=1) / denom

    # Case 1: lane-aligned f32 features; small feat_tile forces multiple
    # reduction steps and >=2 parallel row tiles.
    N1, C1, H1, W1 = 16, 32, 8, 8  # D = 2048
    s1 = jax.random.normal(k1, (N1, C1, H1, W1), jnp.float32)
    q1 = jax.random.normal(k2, (N1, C1, H1, W1), jnp.float32)
    out1 = jax.block_until_ready(cosine_classifier(s1, q1, feat_tile=512))
    assert out1.shape == (N1,) and out1.dtype == jnp.float32
    assert jnp.allclose(out1, reference(s1, q1), atol=1e-4, rtol=1e-4)

    # Case 2: ragged shapes (N % 8 != 0, D % 128 != 0), streamed as native bf16.
    N2, C2, H2, W2 = 10, 3, 7, 7  # D = 147
    s2 = jax.random.normal(k3, (N2, C2, H2, W2), jnp.bfloat16)
    q2 = jax.random.normal(k4, (N2, C2, H2, W2), jnp.bfloat16)
    out2 = jax.block_until_ready(cosine_classifier(s2, q2))
    assert out2.shape == (N2,) and out2.dtype == jnp.bfloat16
    assert jnp.allclose(out2.astype(jnp.float32), reference(s2, q2),
                        atol=2e-2, rtol=2e-2)

    print("KERNEL_OK")
</pallas_src>

<mosaic_0001>
module attributes {stable_mosaic.version = 11 : i64} {
  func.func @_cosine_kernel(%arg0: i32, %arg1: i32, %arg2: memref<8x512xf32, #tpu.memory_space<vmem>>, %arg3: memref<8x512xf32, #tpu.memory_space<vmem>>, %arg4: memref<8x1xf32, #tpu.memory_space<vmem>>, %arg5: memref<8x128xf32, #tpu.memory_space<vmem>>, %arg6: memref<8x128xf32, #tpu.memory_space<vmem>>, %arg7: memref<8x128xf32, #tpu.memory_space<vmem>>) attributes {dimension_semantics = [#tpu.dimension_semantics<parallel>, #tpu.dimension_semantics<arbitrary>], iteration_bounds = array<i64: 2, 4>, scalar_prefetch = 0 : i64, scratch_operands = 3 : i64, tpu.core_type = #tpu.core_type<tc>, window_params = [{transform_indices = @transform_0, window_bounds = array<i64: 8, 512>}, {transform_indices = @transform_1, window_bounds = array<i64: 8, 512>}, {transform_indices = @transform_2, window_bounds = array<i64: 8, 1>}]} {
    %c0_i32 = arith.constant 0 : i32
    %0 = arith.cmpi eq, %arg1, %c0_i32 : i32
    %1 = arith.extui %0 : i1 to i32
    %c0_i32_0 = arith.constant 0 : i32
    %2 = arith.cmpi ne, %1, %c0_i32_0 : i32
    scf.if %2 {
      %cst_28 = arith.constant 0.000000e+00 : f32
      %50 = vector.broadcast %cst_28 : f32 to vector<8x128xf32>
      %c0_29 = arith.constant 0 : index
      %c0_30 = arith.constant 0 : index
      %51 = vector.load %arg5[%c0_29, %c0_30] : memref<8x128xf32, #tpu.memory_space<vmem>>, vector<8x128xf32>
      tpu.vector_store %arg5[%c0_29, %c0_30], %50 {strides = array<i32>} : memref<8x128xf32, #tpu.memory_space<vmem>>, vector<8x128xf32>,
      %cst_31 = arith.constant 0.000000e+00 : f32
      %52 = vector.broadcast %cst_31 : f32 to vector<8x128xf32>
      %c0_32 = arith.constant 0 : index
      %c0_33 = arith.constant 0 : index
      %53 = vector.load %arg6[%c0_32, %c0_33] : memref<8x128xf32, #tpu.memory_space<vmem>>, vector<8x128xf32>
      tpu.vector_store %arg6[%c0_32, %c0_33], %52 {strides = array<i32>} : memref<8x128xf32, #tpu.memory_space<vmem>>, vector<8x128xf32>,
      %cst_34 = arith.constant 0.000000e+00 : f32
      %54 = vector.broadcast %cst_34 : f32 to vector<8x128xf32>
      %c0_35 = arith.constant 0 : index
      %c0_36 = arith.constant 0 : index
      %55 = vector.load %arg7[%c0_35, %c0_36] : memref<8x128xf32, #tpu.memory_space<vmem>>, vector<8x128xf32>
      tpu.vector_store %arg7[%c0_35, %c0_36], %54 {strides = array<i32>} : memref<8x128xf32, #tpu.memory_space<vmem>>, vector<8x128xf32>,
    } else {
    }
    %cst = arith.constant 0.000000e+00 : f32
    %3 = vector.broadcast %cst : f32 to vector<8x128xf32>
    %cst_1 = arith.constant 0.000000e+00 : f32
    %4 = vector.broadcast %cst_1 : f32 to vector<8x128xf32>
    %cst_2 = arith.constant 0.000000e+00 : f32
    %5 = vector.broadcast %cst_2 : f32 to vector<8x128xf32>
    %c0 = arith.constant 0 : index
    %c0_3 = arith.constant 0 : index
    %6 = vector.load %arg2[%c0, %c0_3] : memref<8x512xf32, #tpu.memory_space<vmem>>, vector<8x128xf32>
    %c0_4 = arith.constant 0 : index
    %c0_5 = arith.constant 0 : index
    %7 = vector.load %arg3[%c0_4, %c0_5] : memref<8x512xf32, #tpu.memory_space<vmem>>, vector<8x128xf32>
    %8 = arith.mulf %6, %7 : vector<8x128xf32>
    %9 = arith.addf %3, %8 : vector<8x128xf32>
    %10 = arith.mulf %6, %6 : vector<8x128xf32>
    %11 = arith.addf %4, %10 : vector<8x128xf32>
    %12 = arith.mulf %7, %7 : vector<8x128xf32>
    %13 = arith.addf %5, %12 : vector<8x128xf32>
    %c0_6 = arith.constant 0 : index
    %c128 = arith.constant 128 : index
    %14 = vector.load %arg2[%c0_6, %c128] : memref<8x512xf32, #tpu.memory_space<vmem>>, vector<8x128xf32>
    %c0_7 = arith.constant 0 : index
    %c128_8 = arith.constant 128 : index
    %15 = vector.load %arg3[%c0_7, %c128_8] : memref<8x512xf32, #tpu.memory_space<vmem>>, vector<8x128xf32>
    %16 = arith.mulf %14, %15 : vector<8x128xf32>
    %17 = arith.addf %9, %16 : vector<8x128xf32>
    %18 = arith.mulf %14, %14 : vector<8x128xf32>
    %19 = arith.addf %11, %18 : vector<8x128xf32>
    %20 = arith.mulf %15, %15 : vector<8x128xf32>
    %21 = arith.addf %13, %20 : vector<8x128xf32>
    %c0_9 = arith.constant 0 : index
    %c256 = arith.constant 256 : index
    %22 = vector.load %arg2[%c0_9, %c256] : memref<8x512xf32, #tpu.memory_space<vmem>>, vector<8x128xf32>
    %c0_10 = arith.constant 0 : index
    %c256_11 = arith.constant 256 : index
    %23 = vector.load %arg3[%c0_10, %c256_11] : memref<8x512xf32, #tpu.memory_space<vmem>>, vector<8x128xf32>
    %24 = arith.mulf %22, %23 : vector<8x128xf32>
    %25 = arith.addf %17, %24 : vector<8x128xf32>
    %26 = arith.mulf %22, %22 : vector<8x128xf32>
    %27 = arith.addf %19, %26 : vector<8x128xf32>
    %28 = arith.mulf %23, %23 : vector<8x128xf32>
    %29 = arith.addf %21, %28 : vector<8x128xf32>
    %c0_12 = arith.constant 0 : index
    %c384 = arith.constant 384 : index
    %30 = vector.load %arg2[%c0_12, %c384] : memref<8x512xf32, #tpu.memory_space<vmem>>, vector<8x128xf32>
    %c0_13 = arith.constant 0 : index
    %c384_14 = arith.constant 384 : index
    %31 = vector.load %arg3[%c0_13, %c384_14] : memref<8x512xf32, #tpu.memory_space<vmem>>, vector<8x128xf32>
    %32 = arith.mulf %30, %31 : vector<8x128xf32>
    %33 = arith.addf %25, %32 : vector<8x128xf32>
    %34 = arith.mulf %30, %30 : vector<8x128xf32>
    %35 = arith.addf %27, %34 : vector<8x128xf32>
    %36 = arith.mulf %31, %31 : vector<8x128xf32>
    %37 = arith.addf %29, %36 : vector<8x128xf32>
    %c0_15 = arith.constant 0 : index
    %c0_16 = arith.constant 0 : index
    %38 = vector.load %arg5[%c0_15, %c0_16] : memref<8x128xf32, #tpu.memory_space<vmem>>, vector<8x128xf32>
    %39 = arith.addf %38, %33 : vector<8x128xf32>
    %c0_17 = arith.constant 0 : index
    %c0_18 = arith.constant 0 : index
    %40 = vector.load %arg5[%c0_17, %c0_18] : memref<8x128xf32, #tpu.memory_space<vmem>>, vector<8x128xf32>
    tpu.vector_store %arg5[%c0_17, %c0_18], %39 {strides = array<i32>} : memref<8x128xf32, #tpu.memory_space<vmem>>, vector<8x128xf32>,
    %c0_19 = arith.constant 0 : index
    %c0_20 = arith.constant 0 : index
    %41 = vector.load %arg6[%c0_19, %c0_20] : memref<8x128xf32, #tpu.memory_space<vmem>>, vector<8x128xf32>
    %42 = arith.addf %41, %35 : vector<8x128xf32>
    %c0_21 = arith.constant 0 : index
    %c0_22 = arith.constant 0 : index
    %43 = vector.load %arg6[%c0_21, %c0_22] : memref<8x128xf32, #tpu.memory_space<vmem>>, vector<8x128xf32>
    tpu.vector_store %arg6[%c0_21, %c0_22], %42 {strides = array<i32>} : memref<8x128xf32, #tpu.memory_space<vmem>>, vector<8x128xf32>,
    %c0_23 = arith.constant 0 : index
    %c0_24 = arith.constant 0 : index
    %44 = vector.load %arg7[%c0_23, %c0_24] : memref<8x128xf32, #tpu.memory_space<vmem>>, vector<8x128xf32>
    %45 = arith.addf %44, %37 : vector<8x128xf32>
    %c0_25 = arith.constant 0 : index
    %c0_26 = arith.constant 0 : index
    %46 = vector.load %arg7[%c0_25, %c0_26] : memref<8x128xf32, #tpu.memory_space<vmem>>, vector<8x128xf32>
    tpu.vector_store %arg7[%c0_25, %c0_26], %45 {strides = array<i32>} : memref<8x128xf32, #tpu.memory_space<vmem>>, vector<8x128xf32>,
    %c3_i32 = arith.constant 3 : i32
    %47 = arith.cmpi eq, %arg1, %c3_i32 : i32
    %48 = arith.extui %47 : i1 to i32
    %c0_i32_27 = arith.constant 0 : i32
    %49 = arith.cmpi ne, %48, %c0_i32_27 : i32
    scf.if %49 {
      %c0_28 = arith.constant 0 : index
      %c0_29 = arith.constant 0 : index
      %50 = vector.load %arg5[%c0_28, %c0_29] : memref<8x128xf32, #tpu.memory_space<vmem>>, vector<8x128xf32>
      %cst_30 = arith.constant dense<0.000000e+00> : vector<8xf32>
      %51 = vector.multi_reduction <add>, %50, %cst_30 [1] : vector<8x128xf32> to vector<8xf32>
      %52 = vector.shape_cast %51 : vector<8xf32> to vector<8x1xf32>
      %c0_31 = arith.constant 0 : index
      %c0_32 = arith.constant 0 : index
      %53 = vector.load %arg6[%c0_31, %c0_32] : memref<8x128xf32, #tpu.memory_space<vmem>>, vector<8x128xf32>
      %cst_33 = arith.constant dense<0.000000e+00> : vector<8xf32>
      %54 = vector.multi_reduction <add>, %53, %cst_33 [1] : vector<8x128xf32> to vector<8xf32>
      %55 = vector.shape_cast %54 : vector<8xf32> to vector<8x1xf32>
      %c0_34 = arith.constant 0 : index
      %c0_35 = arith.constant 0 : index
      %56 = vector.load %arg7[%c0_34, %c0_35] : memref<8x128xf32, #tpu.memory_space<vmem>>, vector<8x128xf32>
      %cst_36 = arith.constant dense<0.000000e+00> : vector<8xf32>
      %57 = vector.multi_reduction <add>, %56, %cst_36 [1] : vector<8x128xf32> to vector<8xf32>
      %58 = vector.shape_cast %57 : vector<8xf32> to vector<8x1xf32>
      %59 = arith.mulf %55, %58 : vector<8x1xf32>
      %cst_37 = arith.constant 1.000000e-16 : f32
      %60 = vector.broadcast %cst_37 : f32 to vector<8x1xf32>
      %61 = arith.maximumf %59, %60 : vector<8x1xf32>
      %62 = math.rsqrt %61 : vector<8x1xf32>
      %63 = arith.mulf %52, %62 : vector<8x1xf32>
      %c0_38 = arith.constant 0 : index
      %c0_39 = arith.constant 0 : index
      %64 = vector.load %arg4[%c0_38, %c0_39] : memref<8x1xf32, #tpu.memory_space<vmem>>, vector<8x1xf32>
      tpu.vector_store %arg4[%c0_38, %c0_39], %63 {strides = array<i32>} : memref<8x1xf32, #tpu.memory_space<vmem>>, vector<8x1xf32>,
    } else {
    }
    return
  }
  func.func @transform_0(%arg0: i32, %arg1: i32) -> (i32, i32) {
    %c0_i32 = arith.constant 0 : i32
    return %arg0, %arg1 : i32, i32
  }
  func.func @transform_1(%arg0: i32, %arg1: i32) -> (i32, i32) {
    %c0_i32 = arith.constant 0 : i32
    return %arg0, %arg1 : i32, i32
  }
  func.func @transform_2(%arg0: i32, %arg1: i32) -> (i32, i32) {
    %c0_i32 = arith.constant 0 : i32
    %c0_i32_0 = arith.constant 0 : i32
    return %arg0, %c0_i32 : i32, i32
  }
}

</mosaic_0001>

<llo_original>
// kernel: tpu_custom_call.1
$region0: #{tpu_custom_call.1}
  #allocation0 [shape = 'u32[]', space=smem, size = 0x4, offset = 0x4, fixed_abs, tag = 'smem constant byte address 0x4 - core index']
  #allocation1 [shape = 'u32[72,128]{1,0:T(1,128)}', space=vmem, size = 0x9000, scoped, tag = 'internal scratch']
  #allocation2 [shape = 'f32[8,128]{1,0:T(8,128)}', space=vmem, size = 0x1000, scoped, tag = 'scratch operand']
  #allocation3 [shape = 'f32[8,128]{1,0:T(8,128)}', space=vmem, size = 0x1000, scoped, tag = 'scratch operand']
  #allocation4 [shape = 'f32[8,128]{1,0:T(8,128)}', space=vmem, size = 0x1000, scoped, tag = 'scratch operand']
  %s0 = inlined_call_operand.hbm [shape: f32[16,2048], index: 0, kind: input, shape index: {}]
  %s1 = inlined_call_operand.hbm [shape: f32[16,2048], index: 1, kind: input, shape index: {}]
  %s2 = inlined_call_operand.vmem [shape: f32[16,1], index: 2, kind: output, shape index: {}]
  %s3 = sld [smem:[#allocation0]]
  $region57: #{tpu_custom_call.1} parent=0
    _
  %s5 = ssub.s32 1, %s3
  %s6 = scalar_select 0, %s5, %s3
  $region1: #{tpu_custom_call.1} parent=0
    #allocation5 [shape = 'u8[32768]{0}', space=vmem, size = 0x8000, scoped, tag = 'input window, operand 0']
    #allocation6 [shape = 's32[2]{0}', space=sflag, size = 0x8, scoped, tag = 'scoped memory for tpu_custom_call.1']
    #allocation7 [shape = 'u8[32768]{0}', space=vmem, size = 0x8000, scoped, tag = 'input window, operand 1']
    #allocation8 [shape = 's32[2]{0}', space=sflag, size = 0x8, scoped, tag = 'scoped memory for tpu_custom_call.1']
    %7 = vsyncpa [#allocation6], 0
    %s8 = scalar_lea.sflag [#allocation6], 1
    %9 = vsyncpa %s8, 0
    %10 = vsyncpa [#allocation8], 0
    %s11 = scalar_lea.sflag [#allocation8], 1
    %12 = vsyncpa %s11, 0
    loop: start=0, step=1, limit=10
    $region2: #{tpu_custom_call.1} parent=1 // loop_pre_header
      _
    $region3: #{tpu_custom_call.1} parent=1 // loop_header
      %s14 = sphi 0, %s18
      %p15 = scmp.ge.s32.totalorder %s14, 10
      %s21 = sphi 0, %s33
      %s22 = sphi 0, %s29
      %s23 = sphi 0, %s21
      %s24 = sphi 0, %s22
      %s25 = sphi 0, %s23
      %s26 = sphi 0, %s24
      %s38 = sphi 0, %s40
      %s41 = sphi 0, %s38
      %s42 = sphi 0, %s41
      %s58 = sphi 0, %s42
      %s66 = sphi 0, %s68
      %s69 = sphi 0, %s66
      %s70 = sphi 0, %s69
      %s86 = sphi 0, %s70
      %s92 = sphi 0, %s94
      %s95 = sphi 0, %s92
      %s96 = sphi 0, %s95
      %s112 = sphi 0, %s96
    $region4: #{tpu_custom_call.1} parent=1 // loop_header_branch
      %17 = sbr.rel (%p15) target = $region8
    $region5: #{tpu_custom_call.1} parent=1 // loop_body
      %s19 = ssub.s32 %s14, 1
      %s20 = ssub.s32 %s14, 2
      %s27 = sadd.s32 1, %s22
      %p28 = scmp.ge.s32.totalorder %s27, 4
      %s29 = scalar_select %p28, 0, %s27
      %s30 = sadd.s32 1, %s21
      %s31 = scalar_select %p28, %s30, %s21
      %p32 = scmp.ge.s32.totalorder %s31, 2
      %s33 = scalar_select %p32, 0, %s31
      %s34 = ssub.s32 %s21, %s33
      %s35 = ssub.s32 %s22, %s29
      %s36 = sor.u32 %s34, %s35
      %p37 = scmp.eq.s32.totalorder %s36, 0
      %s39 = sadd.s32 %s38, 1
      %s40 = scalar_select %p37, %s38, %s39
      %p43 = pneg %p37
      %p44 = scmp.eq.s32.totalorder %s14, 7
      %p45 = por %p43, %p44
      %p46 = scmp.ne.s32.totalorder %s38, %s41
      %p47 = scmp.eq.s32.totalorder %s14, 0
      %p48 = por %p46, %p47
      %p49 = scmp.ne.s32.totalorder %s38, %s41
      %p50 = scmp.eq.s32.totalorder %s19, 7
      %p51 = por %p49, %p50
      %p52 = scmp.ne.s32.totalorder %s41, %s42
      %p53 = scmp.eq.s32.totalorder %s19, 0
      %p54 = por %p52, %p53
      %p55 = scmp.ne.s32.totalorder %s41, %s42
      %p56 = scmp.eq.s32.totalorder %s20, 7
      %p57 = por %p55, %p56
      %p59 = scmp.ne.s32.totalorder %s42, %s58
      %p60 = scmp.eq.s32.totalorder %s20, 0
      %p61 = por %p59, %p60
      %s62 = ssub.s32 %s21, %s33
      %s63 = ssub.s32 %s22, %s29
      %s64 = sor.u32 %s62, %s63
      %p65 = scmp.eq.s32.totalorder %s64, 0
      %s67 = sadd.s32 %s66, 1
      %s68 = scalar_select %p65, %s66, %s67
      %p71 = pneg %p65
      %p72 = scmp.eq.s32.totalorder %s14, 7
      %p73 = por %p71, %p72
      %p74 = scmp.ne.s32.totalorder %s66, %s69
      %p75 = scmp.eq.s32.totalorder %s14, 0
      %p76 = por %p74, %p75
      %p77 = scmp.ne.s32.totalorder %s66, %s69
      %p78 = scmp.eq.s32.totalorder %s19, 7
      %p79 = por %p77, %p78
      %p80 = scmp.ne.s32.totalorder %s69, %s70
      %p81 = scmp.eq.s32.totalorder %s19, 0
      %p82 = por %p80, %p81
      %p83 = scmp.ne.s32.totalorder %s69, %s70
      %p84 = scmp.eq.s32.totalorder %s20, 7
      %p85 = por %p83, %p84
      %p87 = scmp.ne.s32.totalorder %s70, %s86
      %p88 = scmp.eq.s32.totalorder %s20, 0
      %p89 = por %p87, %p88
      %s90 = ssub.s32 %s21, %s33
      %p91 = scmp.eq.s32.totalorder %s90, 0
      %s93 = sadd.s32 %s92, 1
      %s94 = scalar_select %p91, %s92, %s93
      %p97 = pneg %p91
      %p98 = scmp.eq.s32.totalorder %s14, 7
      %p99 = por %p97, %p98
      %p100 = scmp.ne.s32.totalorder %s92, %s95
      %p101 = scmp.eq.s32.totalorder %s14, 0
      %p102 = por %p100, %p101
      %p103 = scmp.ne.s32.totalorder %s92, %s95
      %p104 = scmp.eq.s32.totalorder %s19, 7
      %p105 = por %p103, %p104
      %p106 = scmp.ne.s32.totalorder %s95, %s96
      %p107 = scmp.eq.s32.totalorder %s19, 0
      %p108 = por %p106, %p107
      %p109 = scmp.ne.s32.totalorder %s95, %s96
      %p110 = scmp.eq.s32.totalorder %s20, 7
      %p111 = por %p109, %p110
      %p113 = scmp.ne.s32.totalorder %s96, %s112
      %p114 = scmp.eq.s32.totalorder %s20, 0
      %p115 = por %p113, %p114
      %p116 = scmp.le.s32.totalorder 1, %s14
      %p117 = scmp.lt.s32.totalorder %s14, 9
      %p118 = pnand %p116, %p117
      %p119 = pneg %p118
      // Predicated region
      $region9: #{tpu_custom_call.1} parent=5 // pred_check
        _
      $region10: #{tpu_custom_call.1} parent=5 // pred_check_branch
        %121 = sbr.rel (%p118) target = $region12
      $region11: #{tpu_custom_call.1} parent=5 // pred_region
        %s122 = ssub.s32 %s14, 1
      $region12: #{tpu_custom_call.1} parent=5 // pred_fallthru
        _
      %p123 = scmp.lt.s32.totalorder %s14, 8
      // Predicated region
      $region13: #{tpu_custom_call.1} parent=5 // pred_check
        %p124 = pneg %p123
      $region14: #{tpu_custom_call.1} parent=5 // pred_check_branch
        %126 = sbr.rel (%p124) target = $region16
      $region15: #{tpu_custom_call.1} parent=5 // pred_region
        // Predicated region
        $region17: #{tpu_custom_call.1} parent=15 // pred_check
          %p127 = pneg %p48
        $region18: #{tpu_custom_call.1} parent=15 // pred_check_branch
          %129 = sbr.rel (%p127) target = $region20
        $region19: #{tpu_custom_call.1} parent=15 // pred_region
          %s130 = sand.u32 %s38, 1
          %s131 = scalar_lea.sflag [#allocation6], %s130
          %s132 = sand.u32 %s38, 1
          %s133 = smul.addr %s132, 32
          %s134 = scalar_lea.vmem [#allocation5], %s133
          %s135 = smul.u32 4, %s22
          %137 = vsyncadd %s131, 0
          %s138 = smul.addr %s21, 16
          %s139 = sadd.s32 %s135, %s138
          %s140 = smul.addr %s139, 8
          %s141 = scalar_lea.hbm %s0, %s140
          %s143 = sshll.u32 %s141, 4
          %s144 = int_to_ptr.hbm [resolvable:$true] %s143
          %s145 = sshll.u32 %s134, 4
          %s146 = int_to_ptr.vmem [resolvable:$true] %s145
          %148 = dma.hbm_to_vmem [thread:$0]  %s144, 512, %s146, %s131
        $region20: #{tpu_custom_call.1} parent=15 // pred_fallthru
          _
        // Predicated region
        $region21: #{tpu_custom_call.1} parent=15 // pred_check
          %p149 = pneg %p76
        $region22: #{tpu_custom_call.1} parent=15 // pred_check_branch
          %151 = sbr.rel (%p149) target = $region24
        $region23: #{tpu_custom_call.1} parent=15 // pred_region
          %s152 = sand.u32 %s66, 1
          %s153 = scalar_lea.sflag [#allocation8], %s152
          %s154 = sand.u32 %s66, 1
          %s155 = smul.addr %s154, 32
          %s156 = scalar_lea.vmem [#allocation7], %s155
          %s157 = smul.u32 4, %s22
          %159 = vsyncadd %s153, 0
          %s160 = smul.addr %s21, 16
          %s161 = sadd.s32 %s157, %s160
          %s162 = smul.addr %s161, 8
          %s163 = scalar_lea.hbm %s1, %s162
          %s165 = sshll.u32 %s163, 4
          %s166 = int_to_ptr.hbm [resolvable:$true] %s165
          %s167 = sshll.u32 %s156, 4
          %s168 = int_to_ptr.vmem [resolvable:$true] %s167
          %170 = dma.hbm_to_vmem [thread:$0]  %s166, 512, %s168, %s153
        $region24: #{tpu_custom_call.1} parent=15 // pred_fallthru
          _
      $region16: #{tpu_custom_call.1} parent=5 // pred_fallthru
        _
      %p171 = scmp.le.s32.totalorder 1, %s14
      %p172 = scmp.lt.s32.totalorder %s14, 9
      %p173 = pnand %p171, %p172
      %p174 = pneg %p173
      // Predicated region
      $region25: #{tpu_custom_call.1} parent=5 // pred_check
        _
      $region26: #{tpu_custom_call.1} parent=5 // pred_check_branch
        %176 = sbr.rel (%p173) target = $region28
      $region27: #{tpu_custom_call.1} parent=5 // pred_region
        %s177 = ssub.s32 %s14, 1
        %s178 = sand.u32 %s41, 1
        %s179 = scalar_lea.sflag [#allocation6], %s178
        %s180 = sand.u32 %s41, 1
        %s181 = smul.addr %s180, 32
        %s182 = scalar_lea.vmem [#allocation5], %s181
        // Predicated region
        $region29: #{tpu_custom_call.1} parent=27 // pred_check
          %p183 = pneg %p54
        $region30: #{tpu_custom_call.1} parent=27 // pred_check_branch
          %185 = sbr.rel (%p183) target = $region32
        $region31: #{tpu_custom_call.1} parent=27 // pred_region
          %187 = dma.done %s179, 512
        $region32: #{tpu_custom_call.1} parent=27 // pred_fallthru
          _
        %s188 = sand.u32 %s69, 1
        %s189 = scalar_lea.sflag [#allocation8], %s188
        %s190 = sand.u32 %s69, 1
        %s191 = smul.addr %s190, 32
        %s192 = scalar_lea.vmem [#allocation7], %s191
        // Predicated region
        $region33: #{tpu_custom_call.1} parent=27 // pred_check
          %p193 = pneg %p82
        $region34: #{tpu_custom_call.1} parent=27 // pred_check_branch
          %195 = sbr.rel (%p193) target = $region36
        $region35: #{tpu_custom_call.1} parent=27 // pred_region
          %197 = dma.done %s189, 512
        $region36: #{tpu_custom_call.1} parent=27 // pred_fallthru
          _
        %s198 = sand.u32 %s41, 1
        %s199 = scalar_lea.sflag [#allocation6], %s198
        %s200 = sand.u32 %s41, 1
        %s201 = smul.addr %s200, 32
        %s202 = scalar_lea.vmem [#allocation5], %s201
        %p203 = pneg %p54
        %p204 = pneg %p51
        %s205 = sand.u32 %s69, 1
        %s206 = scalar_lea.sflag [#allocation8], %s205
        %s207 = sand.u32 %s69, 1
        %s208 = smul.addr %s207, 32
        %s209 = scalar_lea.vmem [#allocation7], %s208
        %p210 = pneg %p82
        %p211 = pneg %p79
        %p212 = pneg %p108
        %p213 = pneg %p105
        %p214 = scmp.lt.s32.totalorder %s23, 1
        %s215 = scalar_select %p214, %s23, 1
        %s216 = smul.addr %s215, 8
        %s217 = scalar_lea.vmem %s2, %s216
        %s218 = smul.u32 4, %s24
        %s219 = smul.u32 4, %s24
        %p220 = scmp.lt.s32.totalorder %s23, 1
        %s221 = scalar_select %p220, %s23, 1
        %s222 = smul.addr %s221, 8
        %s223 = scalar_lea.vmem %s2, %s222
        %p224 = scmp.eq.s32.totalorder %s24, 0
        // Predicated region
        $region37: #{tpu_custom_call.1} parent=27 // pred_check
          %p225 = pneg %p224
        $region38: #{tpu_custom_call.1} parent=27 // pred_check_branch
          %227 = sbr.rel (%p225) target = $region40
        $region39: #{tpu_custom_call.1} parent=27 // pred_region
          %228 = vst [vmem:[#allocation2] sm:$0xff] 0.0
          %229 = vst [vmem:[#allocation3] sm:$0xff] 0.0
          %230 = vst [vmem:[#allocation4] sm:$0xff] 0.0
        $region40: #{tpu_custom_call.1} parent=27 // pred_fallthru
          _
        %v231 = vld [vmem:[%s182] sm:$0xff]
        %v232 = vld [vmem:[%s192] sm:$0xff]
        %v233 = vmul.f32 %v231, %v232
        %v234 = vadd.f32 %v233, 0.0
        %v235 = vmul.f32 %v231, %v231
        %v236 = vadd.f32 %v235, 0.0
        %v237 = vmul.f32 %v232, %v232
        %v238 = vadd.f32 %v237, 0.0
        %v239 = vld [vmem:[%s182 + $0x8] sm:$0xff]
        %v240 = vld [vmem:[%s192 + $0x8] sm:$0xff]
        %v241 = vmul.f32 %v239, %v240
        %v242 = vadd.f32 %v234, %v241
        %v243 = vmul.f32 %v239, %v239
        %v244 = vadd.f32 %v236, %v243
        %v245 = vmul.f32 %v240, %v240
        %v246 = vadd.f32 %v238, %v245
        %v247 = vld [vmem:[%s182 + $0x10] sm:$0xff]
        %v248 = vld [vmem:[%s192 + $0x10] sm:$0xff]
        %v249 = vmul.f32 %v247, %v248
        %v250 = vadd.f32 %v242, %v249
        %v251 = vmul.f32 %v247, %v247
        %v252 = vadd.f32 %v244, %v251
        %v253 = vmul.f32 %v248, %v248
        %v254 = vadd.f32 %v246, %v253
        %v255 = vld [vmem:[%s182 + $0x18] sm:$0xff]
        %v256 = vld [vmem:[%s192 + $0x18] sm:$0xff]
        %v257 = vmul.f32 %v255, %v256
        %v258 = vadd.f32 %v250, %v257
        %v259 = vmul.f32 %v255, %v255
        %v260 = vadd.f32 %v252, %v259
        %v261 = vmul.f32 %v256, %v256
        %v262 = vadd.f32 %v254, %v261
        %v263 = vld [vmem:[#allocation2] sm:$0xff]
        %v264 = vadd.f32 %v263, %v258
        %265 = vst [vmem:[#allocation2] sm:$0xff] %v264
        %v266 = vld [vmem:[#allocation3] sm:$0xff]
        %v267 = vadd.f32 %v266, %v260
        %268 = vst [vmem:[#allocation3] sm:$0xff] %v267
        %v269 = vld [vmem:[#allocation4] sm:$0xff]
        %v270 = vadd.f32 %v269, %v262
        %271 = vst [vmem:[#allocation4] sm:$0xff] %v270
        %p272 = scmp.eq.s32.totalorder %s24, 3
        // Predicated region
        $region41: #{tpu_custom_call.1} parent=27 // pred_check
          %p273 = pneg %p272
        $region42: #{tpu_custom_call.1} parent=27 // pred_check_branch
          %275 = sbr.rel (%p273) target = $region44
        $region43: #{tpu_custom_call.1} parent=27 // pred_region
          %v276 = vld [vmem:[#allocation2] sm:$0xff]
          %277 = vadd.xlane.f32.xlu0 %v276
          %v278 = vpop.xlane.xlu0 %277
          %v279 = vld [vmem:[#allocation3] sm:$0xff]
          %280 = vadd.xlane.f32.xlu0 %v279
          %v281 = vpop.xlane.xlu0 %280
          %v282 = vld [vmem:[#allocation4] sm:$0xff]
          %283 = vadd.xlane.f32.xlu0 %v282
          %v284 = vpop.xlane.xlu0 %283
          %v285 = vmul.f32 %v281, %v284
          %v286 = vmax.f32 %v285, 1e-16
          %v287 = vrsqrt.pop %v286
          %v288 = vmul.f32 %v287, %v286
          %v289 = vmul.f32 %v288, %v287
          %v290 = vmul.f32 0.5, %v289
          %v291 = vsub.f32 1.5, %v290
          %v292 = vmul.f32 %v287, %v291
          %vm293 = vweird.f32 %v286
          %vm294 = vweird.f32 %v287
          %vm295 = vmor %vm293, %vm294
          %v296 = vsel %vm295, %v287, %v292
          %v297 = vmul.f32 %v278, %v296
          %vm298 = vcmask 7168
          %299 = vst.msk [vmem:[%s223] sm:$0xff] %vm298, %v297
        $region44: #{tpu_custom_call.1} parent=27 // pred_fallthru
          _
        %p300 = scmp.lt.s32.totalorder %s23, 1
        %s301 = scalar_select %p300, %s23, 1
        %s302 = smul.addr %s301, 8
        %s303 = scalar_lea.vmem %s2, %s302
        // Predicated region
        $region45: #{tpu_custom_call.1} parent=27 // pred_check
          %p304 = pneg %p105
        $region46: #{tpu_custom_call.1} parent=27 // pred_check_branch
          %306 = sbr.rel (%p304) target = $region48
        $region47: #{tpu_custom_call.1} parent=27 // pred_region
          _
        $region48: #{tpu_custom_call.1} parent=27 // pred_fallthru
          _
      $region28: #{tpu_custom_call.1} parent=5 // pred_fallthru
        _
      %p307 = scmp.le.s32.totalorder 2, %s14
      // Predicated region
      $region49: #{tpu_custom_call.1} parent=5 // pred_check
        %p308 = pneg %p307
      $region50: #{tpu_custom_call.1} parent=5 // pred_check_branch
        %310 = sbr.rel (%p308) target = $region52
      $region51: #{tpu_custom_call.1} parent=5 // pred_region
        %s311 = ssub.s32 %s14, 2
        // Predicated region
        $region53: #{tpu_custom_call.1} parent=51 // pred_check
          %p312 = pneg %p111
        $region54: #{tpu_custom_call.1} parent=51 // pred_check_branch
          %314 = sbr.rel (%p312) target = $region56
        $region55: #{tpu_custom_call.1} parent=51 // pred_region
          %p315 = scmp.lt.s32.totalorder %s25, 1
          %s316 = scalar_select %p315, %s25, 1
          %s317 = smul.addr %s316, 8
          %s318 = scalar_lea.vmem %s2, %s317
        $region56: #{tpu_custom_call.1} parent=51 // pred_fallthru
          _
      $region52: #{tpu_custom_call.1} parent=5 // pred_fallthru
        _
    $region6: #{tpu_custom_call.1} parent=1 // loop_footer
      %s18 = sadd.s32 1, %s14
    $region7: #{tpu_custom_call.1} parent=1 // loop_footer_branch
      %13 = sbr.rel target = $region3
    $region8: #{tpu_custom_call.1} parent=1 // loop_exit
      _
    %319 = vsyncpa [#allocation6], 1
    %s320 = scalar_lea.sflag [#allocation6], 1
    %321 = vsyncpa %s320, 1
    %322 = vsyncpa [#allocation8], 1
    %s323 = scalar_lea.sflag [#allocation8], 1
    %324 = vsyncpa %s323, 1

</llo_original>
